<compile_context>
chip_gen: v6e
topology: v6e:2x2x1
jax: 0.10.0
libtpu: 0.0.40
codegen_flags: <defaults>
</compile_context>

<pallas_src>
import jax
import jax.numpy as jnp
from jax import lax
from jax.experimental import pallas as pl
from jax.experimental.pallas import tpu as pltpu

IN_FEATURES = 12
OUT_FEATURES = 24

PACK_R = 16                 # row-packing factor: 192-wide input, 384-wide (3x128) output
DEFAULT_TILE_ROWS = 8192    # original rows per grid step on the packed path
UNPACKED_TILE_ROWS = 4096   # cap for the unpacked ragged fallback (lane-padded ~512 B/row/buffer
                            #  per array -> ~8 MiB double-buffered, fits v5e's 16 MiB default)
SINGLE_BLOCK_MAX_ROWS = 512 # below this, one un-gridded block (launch overhead dominates anyway)


def _round_up(a, b):
    return ((a + b - 1) // b) * b


def _linear_bias_relu_kernel(x_ref, w_ref, b_ref, o_ref):
    # x_ref: (tile, K)   w_ref: (F, K)  (PyTorch Linear layout, contracted on K)
    # b_ref: (1, F)      o_ref: (tile, F)
    y = lax.dot_general(
        x_ref[...], w_ref[...],
        dimension_numbers=(((1,), (1,)), ((), ())),   # x @ w.T, native on MXU
        preferred_element_type=jnp.float32)
    o_ref[...] = jnp.maximum(y + b_ref[...], 0.0).astype(o_ref.dtype)


def linear_bias_relu(x, weight, bias, *, tile_rows=DEFAULT_TILE_ROWS, pack_r=PACK_R):
    """relu(x @ weight.T + bias).

    x: (N, 12) f32; weight: (24, 12) f32 (PyTorch Linear layout); bias: (1, 24) f32.
    """
    n = x.shape[0]
    bias2d = bias.reshape(1, OUT_FEATURES)

    # ---- tiny path: single un-gridded block (the module's real N=1..2 case) ----
    if n <= SINGLE_BLOCK_MAX_ROWS:
        return pl.pallas_call(
            _linear_bias_relu_kernel,
            grid=(1,),
            in_specs=[
                pl.BlockSpec((n, IN_FEATURES), lambda i: (0, 0)),
                pl.BlockSpec((OUT_FEATURES, IN_FEATURES), lambda i: (0, 0)),
                pl.BlockSpec((1, OUT_FEATURES), lambda i: (0, 0)),
            ],
            out_specs=pl.BlockSpec((n, OUT_FEATURES), lambda i: (0, 0)),
            out_shape=jax.ShapeDtypeStruct((n, OUT_FEATURES), jnp.float32),
            cost_estimate=pl.CostEstimate(
                flops=2 * n * IN_FEATURES * OUT_FEATURES,
                bytes_accessed=4 * (n * IN_FEATURES + OUT_FEATURES * IN_FEATURES
                                    + OUT_FEATURES + n * OUT_FEATURES),
                transcendentals=0,
            ),
        )(x, weight, bias2d)

    # ---- choose packed (lane-dense) or unpacked (ragged fallback) layout ----
    if n % pack_r == 0:
        r = pack_r
        n_rows = n // r
        in_f = IN_FEATURES * r            # 192
        out_f = OUT_FEATURES * r          # 384, fully 128-lane aligned
        x_in = x.reshape(n_rows, in_f)    # contiguous row-major reshape: zero-cost
        # Block-diagonal weight in (out_f, in_f) layout, r copies of W on the diagonal:
        #   w_in[b*24 + j, a*12 + i] = weight[j, i] if a == b else 0
        eye_r = jnp.eye(r, dtype=weight.dtype)
        w_in = jnp.einsum('ab,ji->bjai', eye_r, weight).reshape(out_f, in_f)
        b_in = jnp.tile(bias2d, (1, r))   # (1, out_f)
        tile_cap = max(8, tile_rows // r)
    else:
        # Ragged N: unpacked layout; Pallas masks the partial last block (no pad/slice).
        r = 1
        n_rows = n
        in_f, out_f = IN_FEATURES, OUT_FEATURES
        x_in, w_in, b_in = x, weight, bias2d
        tile_cap = max(8, min(tile_rows, UNPACKED_TILE_ROWS))

    # Tile: big enough to amortize per-step overhead, but always >= 2 grid steps so
    # the "parallel" batch axis can be sharded over both v7x TensorCores.
    tile = min(tile_cap, _round_up(pl.cdiv(n_rows, 2), 8))
    grid = (pl.cdiv(n_rows, tile),)

    out = pl.pallas_call(
        _linear_bias_relu_kernel,
        grid=grid,
        in_specs=[
            # Streamed row tiles of x (double-buffered by the Pallas pipeline).
            pl.BlockSpec((tile, in_f), lambda i: (i, 0)),
            # Weight / bias: constant block index -> fetched once, stay resident.
            pl.BlockSpec((out_f, in_f), lambda i: (0, 0)),
            pl.BlockSpec((1, out_f), lambda i: (0, 0)),
        ],
        out_specs=pl.BlockSpec((tile, out_f), lambda i: (i, 0)),
        out_shape=jax.ShapeDtypeStruct((n_rows, out_f), jnp.float32),
        compiler_params=pltpu.CompilerParams(
            dimension_semantics=("parallel",),   # megacore: shard batch tiles over both TCs
            vmem_limit_bytes=32 * 1024 * 1024,   # explicit; buffers stay well below this
        ),
        cost_estimate=pl.CostEstimate(
            flops=2 * n_rows * in_f * out_f,     # what the MXU actually executes
            bytes_accessed=4 * (n_rows * in_f + out_f * in_f + out_f + n_rows * out_f),
            transcendentals=0,
        ),
    )(x_in, w_in, b_in)

    return out.reshape(n, OUT_FEATURES) if r > 1 else out


if __name__ == "__main__":
    key = jax.random.PRNGKey(0)
    kx, kw, kb, kx2, kx3 = jax.random.split(key, 5)

    # Parameters (shapes from Model.__init__). The module initializes bias to
    # zeros; use small random values so the bias path is actually exercised.
    weight = jax.random.normal(kw, (OUT_FEATURES, IN_FEATURES), dtype=jnp.float32) * 0.1
    bias = jax.random.normal(kb, (1, OUT_FEATURES), dtype=jnp.float32) * 0.1

    def ref(x):
        return jnp.maximum(x @ weight.T + bias, 0.0)

    # (1) Tiny batch consistent with x1 = torch.randn(1, 12) (use batch=2).
    x_small = jax.random.normal(kx, (2, IN_FEATURES), dtype=jnp.float32)
    out_small = jax.block_until_ready(linear_bias_relu(x_small, weight, bias))
    assert out_small.shape == (2, OUT_FEATURES)
    assert jnp.allclose(out_small, ref(x_small), atol=1e-5), "tiny-path mismatch"

    # (2) Ragged batch (2500 % 16 != 0) -> unpacked gridded path, partial last block,
    #     no wrapper pad / output slice.
    x_rag = jax.random.normal(kx2, (2500, IN_FEATURES), dtype=jnp.float32)
    out_rag = jax.block_until_ready(linear_bias_relu(x_rag, weight, bias))
    assert out_rag.shape == (2500, OUT_FEATURES)
    assert jnp.allclose(out_rag, ref(x_rag), atol=1e-5), "ragged-path mismatch"

    # (3) Packed lane-dense path (4096 % 16 == 0) with a multi-step grid.
    x_big = jax.random.normal(kx3, (4096, IN_FEATURES), dtype=jnp.float32)
    out_big = jax.block_until_ready(linear_bias_relu(x_big, weight, bias))
    assert out_big.shape == (4096, OUT_FEATURES)
    assert jnp.allclose(out_big, ref(x_big), atol=1e-5), "packed-path mismatch"

    print("KERNEL_OK")
</pallas_src>

<mosaic_0001>
module attributes {stable_mosaic.version = 11 : i64} {
  func.func @_linear_bias_relu_kernel(%arg0: i32, %arg1: memref<2x12xf32, #tpu.memory_space<vmem>>, %arg2: memref<24x12xf32, #tpu.memory_space<vmem>>, %arg3: memref<1x24xf32, #tpu.memory_space<vmem>>, %arg4: memref<2x24xf32, #tpu.memory_space<vmem>>) attributes {dimension_semantics = [#tpu.dimension_semantics<arbitrary>], iteration_bounds = array<i64: 1>, scalar_prefetch = 0 : i64, scratch_operands = 0 : i64, tpu.core_type = #tpu.core_type<tc>, window_params = [{pipeline_mode = #tpu.pipeline_mode<synchronous>, transform_indices = @transform_0, window_bounds = array<i64: 2, 12>}, {pipeline_mode = #tpu.pipeline_mode<synchronous>, transform_indices = @transform_1, window_bounds = array<i64: 24, 12>}, {pipeline_mode = #tpu.pipeline_mode<synchronous>, transform_indices = @transform_2, window_bounds = array<i64: 1, 24>}, {pipeline_mode = #tpu.pipeline_mode<synchronous>, transform_indices = @transform_3, window_bounds = array<i64: 2, 24>}]} {
    %c0 = arith.constant 0 : index
    %c0_0 = arith.constant 0 : index
    %0 = vector.load %arg1[%c0, %c0_0] : memref<2x12xf32, #tpu.memory_space<vmem>>, vector<2x12xf32>
    %c0_1 = arith.constant 0 : index
    %c0_2 = arith.constant 0 : index
    %1 = vector.load %arg2[%c0_1, %c0_2] : memref<24x12xf32, #tpu.memory_space<vmem>>, vector<24x12xf32>
    %cst = arith.constant dense<0.000000e+00> : vector<2x24xf32>
    %2 = tpu.matmul %0, %1, %cst {dimension_numbers = #tpu.dot_dimension_numbers<[1], [1], [0], [0], [0, 0, 1, 0], [], []>} : vector<2x12xf32>, vector<24x12xf32>, vector<2x24xf32> -> vector<2x24xf32>
    %c0_3 = arith.constant 0 : index
    %c0_4 = arith.constant 0 : index
    %3 = vector.load %arg3[%c0_3, %c0_4] : memref<1x24xf32, #tpu.memory_space<vmem>>, vector<1x24xf32>
    %4 = vector.broadcast %3 : vector<1x24xf32> to vector<2x24xf32>
    %5 = arith.addf %2, %4 : vector<2x24xf32>
    %cst_5 = arith.constant 0.000000e+00 : f32
    %6 = vector.broadcast %cst_5 : f32 to vector<2x24xf32>
    %7 = arith.maximumf %5, %6 : vector<2x24xf32>
    %c0_6 = arith.constant 0 : index
    %c0_7 = arith.constant 0 : index
    %8 = vector.load %arg4[%c0_6, %c0_7] : memref<2x24xf32, #tpu.memory_space<vmem>>, vector<2x24xf32>
    tpu.vector_store %arg4[%c0_6, %c0_7], %7 {strides = array<i32>} : memref<2x24xf32, #tpu.memory_space<vmem>>, vector<2x24xf32>,
    return
  }
  func.func @transform_0(%arg0: i32) -> (i32, i32) {
    %c0_i32 = arith.constant 0 : i32
    %c0_i32_0 = arith.constant 0 : i32
    %c0_i32_1 = arith.constant 0 : i32
    return %c0_i32, %c0_i32_0 : i32, i32
  }
  func.func @transform_1(%arg0: i32) -> (i32, i32) {
    %c0_i32 = arith.constant 0 : i32
    %c0_i32_0 = arith.constant 0 : i32
    %c0_i32_1 = arith.constant 0 : i32
    return %c0_i32, %c0_i32_0 : i32, i32
  }
  func.func @transform_2(%arg0: i32) -> (i32, i32) {
    %c0_i32 = arith.constant 0 : i32
    %c0_i32_0 = arith.constant 0 : i32
    %c0_i32_1 = arith.constant 0 : i32
    return %c0_i32, %c0_i32_0 : i32, i32
  }
  func.func @transform_3(%arg0: i32) -> (i32, i32) {
    %c0_i32 = arith.constant 0 : i32
    %c0_i32_0 = arith.constant 0 : i32
    %c0_i32_1 = arith.constant 0 : i32
    return %c0_i32, %c0_i32_0 : i32, i32
  }
}

</mosaic_0001>

<llo_original>
// kernel: tpu_custom_call.1
$region0: #{tpu_custom_call.1}
  #allocation0 [shape = 'u32[]', space=smem, size = 0x4, offset = 0x4, fixed_abs, tag = 'smem constant byte address 0x4 - core index']
  #allocation1 [shape = 'u32[144,128]{1,0:T(1,128)}', space=vmem, size = 0x12000, scoped, tag = 'internal scratch']
  %s0 = inlined_call_operand.vmem [shape: f32[2,12], index: 0, kind: input, shape index: {}]
  %s1 = inlined_call_operand.vmem [shape: f32[24,12], index: 1, kind: input, shape index: {}]
  %s2 = inlined_call_operand.vmem [shape: f32[1,24], index: 2, kind: input, shape index: {}]
  %s3 = inlined_call_operand.hbm [shape: f32[2,24], index: 3, kind: output, shape index: {}]
  %s4 = sld [smem:[#allocation0]]
  $region22: #{tpu_custom_call.1} parent=0
    _
  %s6 = ssub.s32 1, %s4
  %s7 = scalar_select 0, %s6, %s4
  $region1: #{tpu_custom_call.1} parent=0
    #allocation2 [shape = 'u8[1024]{0}', space=vmem, size = 0x400, scoped, tag = 'output window, operand 0, single buffered']
    #allocation3 [shape = 's32[1]{0}', space=sflag, size = 0x4, scoped, tag = 'scoped memory for tpu_custom_call.1']
    %8 = vsyncpa [#allocation3], 0
    // Predicated region
    $region2: #{tpu_custom_call.1} parent=1 // pred_check
      _
    $region3: #{tpu_custom_call.1} parent=1 // pred_check_branch
      %10 = sbr.rel (0) target = $region5
    $region4: #{tpu_custom_call.1} parent=1 // pred_region
      _
    $region5: #{tpu_custom_call.1} parent=1 // pred_fallthru
      _
    // Predicated region
    $region6: #{tpu_custom_call.1} parent=1 // pred_check
      _
    $region7: #{tpu_custom_call.1} parent=1 // pred_check_branch
      %12 = sbr.rel (0) target = $region9
    $region8: #{tpu_custom_call.1} parent=1 // pred_region
      _
    $region9: #{tpu_custom_call.1} parent=1 // pred_fallthru
      _
    // Predicated region
    $region10: #{tpu_custom_call.1} parent=1 // pred_check
      _
    $region11: #{tpu_custom_call.1} parent=1 // pred_check_branch
      %14 = sbr.rel (0) target = $region13
    $region12: #{tpu_custom_call.1} parent=1 // pred_region
      _
    $region13: #{tpu_custom_call.1} parent=1 // pred_fallthru
      _
    %v15 = vld [vmem:[%s0] sm:$0x3]
    %v16 = vld [vmem:[%s1] sm:$0xff]
    %v17 = vld [vmem:[%s1 + $0x8] sm:$0xff]
    %v18 = vld [vmem:[%s1 + $0x10] sm:$0xff]
    %v19 = vld [vmem:[%s2] sm:$0x1]
    %v21 = vlaneseq
    %v22 = vshrl.u32 %v21, 7
    %v23 = vsub.s32 0, %v22
    %v24 = vrot.slane %v19, %v23
    %vm26 = vcmask 97280
    %v28 = vsel %vm26, %v15, 0
    %v31 = vsel %vm26, %v16, 0
    %v34 = vsel %vm26, %v17, 0
    %v37 = vsel %vm26, %v18, 0
    %39 = vmatprep.subr.mxu0 0.0
    %40 = vmatpush1.xpose.msra.mxu0 0.0
    %41 = vmatprep.subr.mxu0 0.0
    %42 = vmatpush1.xpose.msra.mxu0 0.0
    %43 = vmatprep.subr.mxu0 0.0
    %44 = vmatpush1.xpose.msra.mxu0 0.0
    %45 = vmatprep.subr.mxu0 0.0
    %46 = vmatpush1.xpose.msra.mxu0 0.0
    %47 = vmatprep.subr.mxu0 0.0
    %48 = vmatpush1.xpose.msra.mxu0 0.0
    %49 = vmatprep.subr.mxu0 0.0
    %50 = vmatpush1.xpose.msra.mxu0 0.0
    %51 = vmatprep.subr.mxu0 0.0
    %52 = vmatpush1.xpose.msra.mxu0 0.0
    %53 = vmatprep.subr.mxu0 0.0
    %54 = vmatpush1.xpose.msra.mxu0 0.0
    %55 = vmatprep.subr.mxu0 0.0
    %56 = vmatpush1.xpose.msra.mxu0 0.0
    %57 = vmatprep.subr.mxu0 0.0
    %58 = vmatpush1.xpose.msra.mxu0 0.0
    %59 = vmatprep.subr.mxu0 0.0
    %60 = vmatpush1.xpose.msra.mxu0 0.0
    %61 = vmatprep.subr.mxu0 0.0
    %62 = vmatpush1.xpose.msra.mxu0 0.0
    %63 = vmatprep.subr.mxu0 0.0
    %64 = vmatpush1.xpose.msra.mxu0 0.0
    %65 = vmatprep.subr.mxu0 0.0
    %66 = vmatpush1.xpose.msra.mxu0 %v37
    %67 = vmatprep.subr.mxu0 0.0
    %68 = vmatpush1.xpose.msra.mxu0 %v34
    %69 = vmatprep.subr.mxu0 0.0
    %70 = vmatpush1.xpose.msra.mxu0 %v31
    %71 = vmatprep.subr.mxu0 0.0
    %72 = vmatpush2.xpose.msra.mxu0 0.0
    %73 = vmatprep.subr.mxu0 0.0
    %74 = vmatpush2.xpose.msra.mxu0 0.0
    %75 = vmatprep.subr.mxu0 0.0
    %76 = vmatpush2.xpose.msra.mxu0 0.0
    %77 = vmatprep.subr.mxu0 0.0
    %78 = vmatpush2.xpose.msra.mxu0 0.0
    %79 = vmatprep.subr.mxu0 0.0
    %80 = vmatpush2.xpose.msra.mxu0 0.0
    %81 = vmatprep.subr.mxu0 0.0
    %82 = vmatpush2.xpose.msra.mxu0 0.0
    %83 = vmatprep.subr.mxu0 0.0
    %84 = vmatpush2.xpose.msra.mxu0 0.0
    %85 = vmatprep.subr.mxu0 0.0
    %86 = vmatpush2.xpose.msra.mxu0 0.0
    %87 = vmatprep.subr.mxu0 0.0
    %88 = vmatpush2.xpose.msra.mxu0 0.0
    %89 = vmatprep.subr.mxu0 0.0
    %90 = vmatpush2.xpose.msra.mxu0 0.0
    %91 = vmatprep.subr.mxu0 0.0
    %92 = vmatpush2.xpose.msra.mxu0 0.0
    %93 = vmatprep.subr.mxu0 0.0
    %94 = vmatpush2.xpose.msra.mxu0 0.0
    %95 = vmatprep.subr.mxu0 0.0
    %96 = vmatpush2.xpose.msra.mxu0 0.0
    %97 = vmatprep.subr.mxu0 0.0
    %98 = vmatpush2.xpose.msra.mxu0 0.0
    %99 = vmatprep.subr.mxu0 0.0
    %100 = vmatpush2.xpose.msra.mxu0 0.0
    %101 = vmatprep.subr.mxu0 0.0
    %102 = vmatpush2.xpose.msra.mxu0 0.0
    %103 = vmatprep.mubr.f32.mxu0 0.0
    %104 = vmatmul.mubr.f32.gmra.mxu0 %v28
    %v105 = vpop.f32.mrf.mxu0
    %v106 = vadd.f32 %v24, %v105
    %v107 = vpop.f32.mrf.mxu0
    %108 = vdwg.mxu0
    %v109 = vmax.f32 %v106, 0.0
    %vm110 = vcmask 189440
    %111 = vst.msk [vmem:[#allocation2] sm:$0x3] %vm110, %v109
    // Predicated region
    $region14: #{tpu_custom_call.1} parent=1 // pred_check
      _
    $region15: #{tpu_custom_call.1} parent=1 // pred_check_branch
      %113 = sbr.rel (0) target = $region17
    $region16: #{tpu_custom_call.1} parent=1 // pred_region
      %s115 = ssub.s32 32, 32
      %116 = vsyncadd [#allocation3], %s115
      %s118 = sshll.u32 [#allocation2], 4
      %s119 = int_to_ptr.vmem [resolvable:$true] %s118
      %121 = dma.vmem_to_hbm [thread:$0]  %s119, 32, %s3, [#allocation3]
    $region17: #{tpu_custom_call.1} parent=1 // pred_fallthru
      _
    // Predicated region
    $region18: #{tpu_custom_call.1} parent=1 // pred_check
      _
    $region19: #{tpu_custom_call.1} parent=1 // pred_check_branch
      %123 = sbr.rel (0) target = $region21
    $region20: #{tpu_custom_call.1} parent=1 // pred_region
      %124 = dma.done [#allocation3], 32
    $region21: #{tpu_custom_call.1} parent=1 // pred_fallthru
      _
    %125 = vsyncpa [#allocation3], 1

</llo_original>
